<compile_context>
chip_gen: v7x
topology: tpu7x:2x2x1
jax: 0.10.0
libtpu: 0.0.40
codegen_flags: <defaults>
</compile_context>

<pallas_src>
import functools

import jax
import jax.numpy as jnp
from jax.experimental import pallas as pl
from jax.experimental.pallas import tpu as pltpu

SUBLANE = 8
LANE = 128


def _round_up(a, m):
    return ((a + m - 1) // m) * m


def _pick_act_dtype():
    """bf16 activations only on bf16-capable VPU/EUP (v6e / v7x); else f32."""
    try:
        kind = jax.devices()[0].device_kind.lower()
    except Exception:  # pragma: no cover - defensive
        return jnp.float32
    if ("v6" in kind) or ("v7" in kind) or ("7x" in kind):
        return jnp.bfloat16
    return jnp.float32


def _mlp_kernel(x_ref, w0_ref, w_ref, b_ref, o_ref):
    """Fused 8-layer MLP on one batch tile (transposed layout).

    x_ref:  (in_dim, TB) bf16      -- batch on lanes
    w0_ref: (FP, in_dim) bf16      -- folded first-layer weight (0.5 * W0^T)
    w_ref:  (L-1, FP, FP) bf16     -- folded remaining weights (0.25 * Wi^T)
    b_ref:  (L, FP, 1) act_dtype   -- folded biases
    o_ref:  (out_dim, TB) f32
    """
    act_dtype = b_ref.dtype

    # Layer 0: t0 = tanh(0.5*(W0^T x + b0)).
    z = jnp.dot(w0_ref[...], x_ref[...], preferred_element_type=jnp.float32)
    t = jnp.tanh(z.astype(act_dtype) + b_ref[0])

    # Layers 1..L-1: affine of previous sigmoid already folded into W'/b'.
    for i in range(w_ref.shape[0]):
        z = jnp.dot(w_ref[i], t.astype(jnp.bfloat16),
                    preferred_element_type=jnp.float32)
        t = jnp.tanh(z.astype(act_dtype) + b_ref[i + 1])

    # Only the last layer keeps the explicit sigmoid affine; slice to real rows
    # first (out_dim sublanes), store is lane-dense along the batch.
    t_out = t[: o_ref.shape[0], :].astype(jnp.float32)
    o_ref[...] = 0.5 * t_out + 0.5


@functools.partial(jax.jit, static_argnames=("out_dim", "tile_b"))
def neural_network_forward(x, w0, w_stack, b_stack, *, out_dim, tile_b=1024):
    """x: (B, in_dim) f32. Returns (B, out_dim) f32 == sigmoid-MLP forward."""
    B, in_dim = x.shape
    fp = w0.shape[0]
    n_rest = w_stack.shape[0]          # static
    n_layers = n_rest + 1

    # Batch tile (lane dim): multiple of 128, capped at tile_b, and split so the
    # grid has >=2 steps when possible (lets v7x use both TensorCores).
    half = -(-B // 2)
    tb = min(tile_b, _round_up(half, LANE))
    tb = max(LANE, (tb // LANE) * LANE)
    b_pad = _round_up(B, tb)

    xt = x.astype(jnp.bfloat16).T                       # (in_dim, B), tiny transpose
    if b_pad != B:
        xt = jnp.pad(xt, ((0, 0), (0, b_pad - B)))

    out = pl.pallas_call(
        _mlp_kernel,
        out_shape=jax.ShapeDtypeStruct((out_dim, b_pad), jnp.float32),
        grid_spec=pltpu.PrefetchScalarGridSpec(
            num_scalar_prefetch=0,
            grid=(b_pad // tb,),
            in_specs=[
                # Activations: batch-tiled along lanes, pipelined HBM<->VMEM.
                pl.BlockSpec((in_dim, tb), lambda i: (0, i)),
                # Weights / biases: constant index_map -> DMA'd once, resident.
                pl.BlockSpec((fp, in_dim), lambda i: (0, 0)),
                pl.BlockSpec((n_rest, fp, fp), lambda i: (0, 0, 0)),
                pl.BlockSpec((n_layers, fp, 1), lambda i: (0, 0, 0)),
            ],
            out_specs=pl.BlockSpec((out_dim, tb), lambda i: (0, i)),
        ),
        compiler_params=pltpu.CompilerParams(
            dimension_semantics=("parallel",)),
    )(xt, w0, w_stack, b_stack)

    out = out[:, :B] if b_pad != B else out
    return out.T                                        # (B, out_dim)


def init_params(key, in_dim, out_dim):
    """PyTorch-Linear-style init; returns folded/padded kernel params + raw f32 params.

    Folding (kernel computes t_i = tanh(W'_i t_{i-1} + b'_i), y = 0.5 + 0.5*t_last):
      layer 0:    W'_0 = 0.5  * W0^T,  b'_0 = 0.5 * b0
      layer i>=1: W'_i = 0.25 * Wi^T,  b'_i = 0.5 * bi + 0.25 * sum_fan_in(Wi^T)
    Padded rows/cols/bias lanes MUST stay exactly zero so dead-lane tanh(0)=0
    never touches real lanes.
    """
    layer_dims = [(in_dim, 20), (20, 10),
                  (10, 10), (10, 10), (10, 10), (10, 10), (10, 10),
                  (10, out_dim)]                              # 8 Linear+Sigmoid stages
    n = len(layer_dims)
    fp = max(SUBLANE, _round_up(max(fo for _, fo in layer_dims), SUBLANE))
    keys = jax.random.split(key, 2 * n)

    raw = []   # [(A (fo, fi), b (fo,))] in f32, original (unfolded) semantics
    for i, (fi, fo) in enumerate(layer_dims):
        bound = 1.0 / (fi ** 0.5)
        a = jax.random.uniform(keys[2 * i], (fo, fi), jnp.float32, -bound, bound)
        b = jax.random.uniform(keys[2 * i + 1], (fo,), jnp.float32, -bound, bound)
        raw.append((a, b))

    fo0 = layer_dims[0][1]
    w0 = jnp.zeros((fp, in_dim), jnp.float32).at[:fo0, :].set(0.5 * raw[0][0])
    b_stack = jnp.zeros((n, fp, 1), jnp.float32)
    b_stack = b_stack.at[0, :fo0, 0].set(0.5 * raw[0][1])

    w_list = []
    for i in range(1, n):
        fi, fo = layer_dims[i]
        a, b = raw[i]
        w_list.append(jnp.zeros((fp, fp), jnp.float32).at[:fo, :fi].set(0.25 * a))
        b_fold = 0.5 * b + 0.25 * jnp.sum(a, axis=1)
        b_stack = b_stack.at[i, :fo, 0].set(b_fold)
    w_stack = jnp.stack(w_list, axis=0)

    # bf16 weights: MXU-native everywhere, halves weight HBM/VMEM bytes.
    return (w0.astype(jnp.bfloat16), w_stack.astype(jnp.bfloat16), b_stack), raw


def reference_forward(x, raw_params):
    """Plain-JAX f32 reference of the ORIGINAL PyTorch module semantics."""
    h = x
    for a, b in raw_params:
        h = jax.nn.sigmoid(h @ a.T + b)
    return h


if __name__ == "__main__":
    in_dim, out_dim, batch = 16, 4, 2
    key = jax.random.PRNGKey(0)
    k_x, k_p = jax.random.split(key)
    x = jax.random.normal(k_x, (batch, in_dim), jnp.float32)

    (w0, w_stack, b_stack), raw = init_params(k_p, in_dim, out_dim)
    b_stack = b_stack.astype(_pick_act_dtype())   # bf16 acts on v6e/v7x, f32 elsewhere

    y = neural_network_forward(x, w0, w_stack, b_stack, out_dim=out_dim)
    y = jax.block_until_ready(y)

    y_ref = reference_forward(x, raw)
    assert y.shape == (batch, out_dim), y.shape
    # bf16 weights (and bf16 activations on v6e/v7x) vs true f32 torch math:
    # expected error is ~1e-2 absolute on sigmoid outputs in (0, 1).
    assert jnp.allclose(y, y_ref, atol=5e-2, rtol=5e-2), (y, y_ref)

    print("KERNEL_OK")
</pallas_src>

<mosaic_0001>
module attributes {stable_mosaic.version = 11 : i64} {
  func.func @_mlp_kernel(%arg0: i32, %arg1: memref<16x128xbf16, #tpu.memory_space<vmem>>, %arg2: memref<24x16xbf16, #tpu.memory_space<vmem>>, %arg3: memref<7x24x24xbf16, #tpu.memory_space<vmem>>, %arg4: memref<8x24x1xf32, #tpu.memory_space<vmem>>, %arg5: memref<4x128xf32, #tpu.memory_space<vmem>>) attributes {dimension_semantics = [#tpu.dimension_semantics<parallel>], iteration_bounds = array<i64: 1>, scalar_prefetch = 0 : i64, scratch_operands = 0 : i64, tpu.core_type = #tpu.core_type<tc>, window_params = [{transform_indices = @transform_0, window_bounds = array<i64: 16, 128>}, {pipeline_mode = #tpu.pipeline_mode<synchronous>, transform_indices = @transform_1, window_bounds = array<i64: 24, 16>}, {pipeline_mode = #tpu.pipeline_mode<synchronous>, transform_indices = @transform_2, window_bounds = array<i64: 7, 24, 24>}, {pipeline_mode = #tpu.pipeline_mode<synchronous>, transform_indices = @transform_3, window_bounds = array<i64: 8, 24, 1>}, {transform_indices = @transform_4, window_bounds = array<i64: 4, 128>}]} {
    %c0 = arith.constant 0 : index
    %c0_0 = arith.constant 0 : index
    %0 = vector.load %arg2[%c0, %c0_0] : memref<24x16xbf16, #tpu.memory_space<vmem>>, vector<24x16xbf16>
    %c0_1 = arith.constant 0 : index
    %c0_2 = arith.constant 0 : index
    %1 = vector.load %arg1[%c0_1, %c0_2] : memref<16x128xbf16, #tpu.memory_space<vmem>>, vector<16x128xbf16>
    %cst = arith.constant dense<0.000000e+00> : vector<24x128xf32>
    %2 = tpu.matmul %0, %1, %cst {dimension_numbers = #tpu.dot_dimension_numbers<[1], [0], [0], [1], [0, 0, 1, 1], [], []>} : vector<24x16xbf16>, vector<16x128xbf16>, vector<24x128xf32> -> vector<24x128xf32>
    %c0_3 = arith.constant 0 : index
    %c0_4 = arith.constant 0 : index
    %c0_5 = arith.constant 0 : index
    %3 = vector.load %arg4[%c0_3, %c0_4, %c0_5] : memref<8x24x1xf32, #tpu.memory_space<vmem>>, vector<1x24x1xf32>
    %4 = vector.shape_cast %3 : vector<1x24x1xf32> to vector<24x1xf32>
    %5 = vector.broadcast %4 : vector<24x1xf32> to vector<24x128xf32>
    %6 = arith.addf %2, %5 : vector<24x128xf32>
    %7 = math.tanh %6 : vector<24x128xf32>
    %c0_6 = arith.constant 0 : index
    %c0_7 = arith.constant 0 : index
    %c0_8 = arith.constant 0 : index
    %8 = vector.load %arg3[%c0_6, %c0_7, %c0_8] : memref<7x24x24xbf16, #tpu.memory_space<vmem>>, vector<1x24x24xbf16>
    %9 = vector.shape_cast %8 : vector<1x24x24xbf16> to vector<24x24xbf16>
    %10 = arith.truncf %7 : vector<24x128xf32> to vector<24x128xbf16>
    %cst_9 = arith.constant dense<0.000000e+00> : vector<24x128xf32>
    %11 = tpu.matmul %9, %10, %cst_9 {dimension_numbers = #tpu.dot_dimension_numbers<[1], [0], [0], [1], [0, 0, 1, 1], [], []>} : vector<24x24xbf16>, vector<24x128xbf16>, vector<24x128xf32> -> vector<24x128xf32>
    %c1 = arith.constant 1 : index
    %c0_10 = arith.constant 0 : index
    %c0_11 = arith.constant 0 : index
    %12 = vector.load %arg4[%c1, %c0_10, %c0_11] : memref<8x24x1xf32, #tpu.memory_space<vmem>>, vector<1x24x1xf32>
    %13 = vector.shape_cast %12 : vector<1x24x1xf32> to vector<24x1xf32>
    %14 = vector.broadcast %13 : vector<24x1xf32> to vector<24x128xf32>
    %15 = arith.addf %11, %14 : vector<24x128xf32>
    %16 = math.tanh %15 : vector<24x128xf32>
    %c1_12 = arith.constant 1 : index
    %c0_13 = arith.constant 0 : index
    %c0_14 = arith.constant 0 : index
    %17 = vector.load %arg3[%c1_12, %c0_13, %c0_14] : memref<7x24x24xbf16, #tpu.memory_space<vmem>>, vector<1x24x24xbf16>
    %18 = vector.shape_cast %17 : vector<1x24x24xbf16> to vector<24x24xbf16>
    %19 = arith.truncf %16 : vector<24x128xf32> to vector<24x128xbf16>
    %cst_15 = arith.constant dense<0.000000e+00> : vector<24x128xf32>
    %20 = tpu.matmul %18, %19, %cst_15 {dimension_numbers = #tpu.dot_dimension_numbers<[1], [0], [0], [1], [0, 0, 1, 1], [], []>} : vector<24x24xbf16>, vector<24x128xbf16>, vector<24x128xf32> -> vector<24x128xf32>
    %c2 = arith.constant 2 : index
    %c0_16 = arith.constant 0 : index
    %c0_17 = arith.constant 0 : index
    %21 = vector.load %arg4[%c2, %c0_16, %c0_17] : memref<8x24x1xf32, #tpu.memory_space<vmem>>, vector<1x24x1xf32>
    %22 = vector.shape_cast %21 : vector<1x24x1xf32> to vector<24x1xf32>
    %23 = vector.broadcast %22 : vector<24x1xf32> to vector<24x128xf32>
    %24 = arith.addf %20, %23 : vector<24x128xf32>
    %25 = math.tanh %24 : vector<24x128xf32>
    %c2_18 = arith.constant 2 : index
    %c0_19 = arith.constant 0 : index
    %c0_20 = arith.constant 0 : index
    %26 = vector.load %arg3[%c2_18, %c0_19, %c0_20] : memref<7x24x24xbf16, #tpu.memory_space<vmem>>, vector<1x24x24xbf16>
    %27 = vector.shape_cast %26 : vector<1x24x24xbf16> to vector<24x24xbf16>
    %28 = arith.truncf %25 : vector<24x128xf32> to vector<24x128xbf16>
    %cst_21 = arith.constant dense<0.000000e+00> : vector<24x128xf32>
    %29 = tpu.matmul %27, %28, %cst_21 {dimension_numbers = #tpu.dot_dimension_numbers<[1], [0], [0], [1], [0, 0, 1, 1], [], []>} : vector<24x24xbf16>, vector<24x128xbf16>, vector<24x128xf32> -> vector<24x128xf32>
    %c3 = arith.constant 3 : index
    %c0_22 = arith.constant 0 : index
    %c0_23 = arith.constant 0 : index
    %30 = vector.load %arg4[%c3, %c0_22, %c0_23] : memref<8x24x1xf32, #tpu.memory_space<vmem>>, vector<1x24x1xf32>
    %31 = vector.shape_cast %30 : vector<1x24x1xf32> to vector<24x1xf32>
    %32 = vector.broadcast %31 : vector<24x1xf32> to vector<24x128xf32>
    %33 = arith.addf %29, %32 : vector<24x128xf32>
    %34 = math.tanh %33 : vector<24x128xf32>
    %c3_24 = arith.constant 3 : index
    %c0_25 = arith.constant 0 : index
    %c0_26 = arith.constant 0 : index
    %35 = vector.load %arg3[%c3_24, %c0_25, %c0_26] : memref<7x24x24xbf16, #tpu.memory_space<vmem>>, vector<1x24x24xbf16>
    %36 = vector.shape_cast %35 : vector<1x24x24xbf16> to vector<24x24xbf16>
    %37 = arith.truncf %34 : vector<24x128xf32> to vector<24x128xbf16>
    %cst_27 = arith.constant dense<0.000000e+00> : vector<24x128xf32>
    %38 = tpu.matmul %36, %37, %cst_27 {dimension_numbers = #tpu.dot_dimension_numbers<[1], [0], [0], [1], [0, 0, 1, 1], [], []>} : vector<24x24xbf16>, vector<24x128xbf16>, vector<24x128xf32> -> vector<24x128xf32>
    %c4 = arith.constant 4 : index
    %c0_28 = arith.constant 0 : index
    %c0_29 = arith.constant 0 : index
    %39 = vector.load %arg4[%c4, %c0_28, %c0_29] : memref<8x24x1xf32, #tpu.memory_space<vmem>>, vector<1x24x1xf32>
    %40 = vector.shape_cast %39 : vector<1x24x1xf32> to vector<24x1xf32>
    %41 = vector.broadcast %40 : vector<24x1xf32> to vector<24x128xf32>
    %42 = arith.addf %38, %41 : vector<24x128xf32>
    %43 = math.tanh %42 : vector<24x128xf32>
    %c4_30 = arith.constant 4 : index
    %c0_31 = arith.constant 0 : index
    %c0_32 = arith.constant 0 : index
    %44 = vector.load %arg3[%c4_30, %c0_31, %c0_32] : memref<7x24x24xbf16, #tpu.memory_space<vmem>>, vector<1x24x24xbf16>
    %45 = vector.shape_cast %44 : vector<1x24x24xbf16> to vector<24x24xbf16>
    %46 = arith.truncf %43 : vector<24x128xf32> to vector<24x128xbf16>
    %cst_33 = arith.constant dense<0.000000e+00> : vector<24x128xf32>
    %47 = tpu.matmul %45, %46, %cst_33 {dimension_numbers = #tpu.dot_dimension_numbers<[1], [0], [0], [1], [0, 0, 1, 1], [], []>} : vector<24x24xbf16>, vector<24x128xbf16>, vector<24x128xf32> -> vector<24x128xf32>
    %c5 = arith.constant 5 : index
    %c0_34 = arith.constant 0 : index
    %c0_35 = arith.constant 0 : index
    %48 = vector.load %arg4[%c5, %c0_34, %c0_35] : memref<8x24x1xf32, #tpu.memory_space<vmem>>, vector<1x24x1xf32>
    %49 = vector.shape_cast %48 : vector<1x24x1xf32> to vector<24x1xf32>
    %50 = vector.broadcast %49 : vector<24x1xf32> to vector<24x128xf32>
    %51 = arith.addf %47, %50 : vector<24x128xf32>
    %52 = math.tanh %51 : vector<24x128xf32>
    %c5_36 = arith.constant 5 : index
    %c0_37 = arith.constant 0 : index
    %c0_38 = arith.constant 0 : index
    %53 = vector.load %arg3[%c5_36, %c0_37, %c0_38] : memref<7x24x24xbf16, #tpu.memory_space<vmem>>, vector<1x24x24xbf16>
    %54 = vector.shape_cast %53 : vector<1x24x24xbf16> to vector<24x24xbf16>
    %55 = arith.truncf %52 : vector<24x128xf32> to vector<24x128xbf16>
    %cst_39 = arith.constant dense<0.000000e+00> : vector<24x128xf32>
    %56 = tpu.matmul %54, %55, %cst_39 {dimension_numbers = #tpu.dot_dimension_numbers<[1], [0], [0], [1], [0, 0, 1, 1], [], []>} : vector<24x24xbf16>, vector<24x128xbf16>, vector<24x128xf32> -> vector<24x128xf32>
    %c6 = arith.constant 6 : index
    %c0_40 = arith.constant 0 : index
    %c0_41 = arith.constant 0 : index
    %57 = vector.load %arg4[%c6, %c0_40, %c0_41] : memref<8x24x1xf32, #tpu.memory_space<vmem>>, vector<1x24x1xf32>
    %58 = vector.shape_cast %57 : vector<1x24x1xf32> to vector<24x1xf32>
    %59 = vector.broadcast %58 : vector<24x1xf32> to vector<24x128xf32>
    %60 = arith.addf %56, %59 : vector<24x128xf32>
    %61 = math.tanh %60 : vector<24x128xf32>
    %c6_42 = arith.constant 6 : index
    %c0_43 = arith.constant 0 : index
    %c0_44 = arith.constant 0 : index
    %62 = vector.load %arg3[%c6_42, %c0_43, %c0_44] : memref<7x24x24xbf16, #tpu.memory_space<vmem>>, vector<1x24x24xbf16>
    %63 = vector.shape_cast %62 : vector<1x24x24xbf16> to vector<24x24xbf16>
    %64 = arith.truncf %61 : vector<24x128xf32> to vector<24x128xbf16>
    %cst_45 = arith.constant dense<0.000000e+00> : vector<24x128xf32>
    %65 = tpu.matmul %63, %64, %cst_45 {dimension_numbers = #tpu.dot_dimension_numbers<[1], [0], [0], [1], [0, 0, 1, 1], [], []>} : vector<24x24xbf16>, vector<24x128xbf16>, vector<24x128xf32> -> vector<24x128xf32>
    %c7 = arith.constant 7 : index
    %c0_46 = arith.constant 0 : index
    %c0_47 = arith.constant 0 : index
    %66 = vector.load %arg4[%c7, %c0_46, %c0_47] : memref<8x24x1xf32, #tpu.memory_space<vmem>>, vector<1x24x1xf32>
    %67 = vector.shape_cast %66 : vector<1x24x1xf32> to vector<24x1xf32>
    %68 = vector.broadcast %67 : vector<24x1xf32> to vector<24x128xf32>
    %69 = arith.addf %65, %68 : vector<24x128xf32>
    %70 = math.tanh %69 : vector<24x128xf32>
    %71 = vector.extract_strided_slice %70 {offsets = [0, 0], sizes = [4, 128], strides = [1, 1]} : vector<24x128xf32> to vector<4x128xf32>
    %cst_48 = arith.constant 5.000000e-01 : f32
    %72 = vector.broadcast %cst_48 : f32 to vector<4x128xf32>
    %73 = arith.mulf %72, %71 : vector<4x128xf32>
    %cst_49 = arith.constant 5.000000e-01 : f32
    %74 = vector.broadcast %cst_49 : f32 to vector<4x128xf32>
    %75 = arith.addf %73, %74 : vector<4x128xf32>
    %c0_50 = arith.constant 0 : index
    %c0_51 = arith.constant 0 : index
    %76 = vector.load %arg5[%c0_50, %c0_51] : memref<4x128xf32, #tpu.memory_space<vmem>>, vector<4x128xf32>
    tpu.vector_store %arg5[%c0_50, %c0_51], %75 {strides = array<i32>} : memref<4x128xf32, #tpu.memory_space<vmem>>, vector<4x128xf32>,
    return
  }
  func.func @transform_0(%arg0: i32) -> (i32, i32) {
    %c0_i32 = arith.constant 0 : i32
    %c0_i32_0 = arith.constant 0 : i32
    return %c0_i32, %arg0 : i32, i32
  }
  func.func @transform_1(%arg0: i32) -> (i32, i32) {
    %c0_i32 = arith.constant 0 : i32
    %c0_i32_0 = arith.constant 0 : i32
    %c0_i32_1 = arith.constant 0 : i32
    return %c0_i32, %c0_i32_0 : i32, i32
  }
  func.func @transform_2(%arg0: i32) -> (i32, i32, i32) {
    %c0_i32 = arith.constant 0 : i32
    %c0_i32_0 = arith.constant 0 : i32
    %c0_i32_1 = arith.constant 0 : i32
    %c0_i32_2 = arith.constant 0 : i32
    return %c0_i32, %c0_i32_0, %c0_i32_1 : i32, i32, i32
  }
  func.func @transform_3(%arg0: i32) -> (i32, i32, i32) {
    %c0_i32 = arith.constant 0 : i32
    %c0_i32_0 = arith.constant 0 : i32
    %c0_i32_1 = arith.constant 0 : i32
    %c0_i32_2 = arith.constant 0 : i32
    return %c0_i32, %c0_i32_0, %c0_i32_1 : i32, i32, i32
  }
  func.func @transform_4(%arg0: i32) -> (i32, i32) {
    %c0_i32 = arith.constant 0 : i32
    %c0_i32_0 = arith.constant 0 : i32
    return %c0_i32, %arg0 : i32, i32
  }
}

</mosaic_0001>

<llo_original>
// kernel: neural_network_forward.1
$region0: #{neural_network_forward.1}
  #allocation0 [shape = 'u32[]', space=smem, size = 0x4, offset = 0x4, fixed_abs, tag = 'smem constant byte address 0x4 - core index']
  #allocation1 [shape = 'u32[144,128]{1,0:T(1,128)}', space=vmem, size = 0x12000, scoped, tag = 'internal scratch']
  %s0 = inlined_call_operand.vmem [shape: bf16[16,128], index: 0, kind: input, shape index: {}]
  %s1 = inlined_call_operand.vmem [shape: bf16[24,16], index: 1, kind: input, shape index: {}]
  %s2 = inlined_call_operand.vmem [shape: bf16[7,24,24], index: 2, kind: input, shape index: {}]
  %s3 = inlined_call_operand.vmem [shape: f32[8,24,1], index: 3, kind: input, shape index: {}]
  %s4 = inlined_call_operand.vmem [shape: f32[4,128], index: 4, kind: output, shape index: {}]
  %s5 = sld [smem:[#allocation0]]
  $region26: #{neural_network_forward.1} parent=0
    _
  %s7 = ssub.s32 1, %s5
  %s8 = scalar_select 0, %s7, %s5
  // Predicated region
  $region2: #{neural_network_forward.1} parent=0 // pred_check
    _
  $region3: #{neural_network_forward.1} parent=0 // pred_check_branch
    %10 = sbr.rel (0) target = $region5
  $region4: #{neural_network_forward.1} parent=0 // pred_region
    _
  $region5: #{neural_network_forward.1} parent=0 // pred_fallthru
    _
  // Predicated region
  $region6: #{neural_network_forward.1} parent=0 // pred_check
    _
  $region7: #{neural_network_forward.1} parent=0 // pred_check_branch
    %12 = sbr.rel (0) target = $region9
  $region8: #{neural_network_forward.1} parent=0 // pred_region
    _
  $region9: #{neural_network_forward.1} parent=0 // pred_fallthru
    _
  // Predicated region
  $region10: #{neural_network_forward.1} parent=0 // pred_check
    _
  $region11: #{neural_network_forward.1} parent=0 // pred_check_branch
    %14 = sbr.rel (0) target = $region13
  $region12: #{neural_network_forward.1} parent=0 // pred_region
    _
  $region13: #{neural_network_forward.1} parent=0 // pred_fallthru
    _
  // Predicated region
  $region14: #{neural_network_forward.1} parent=0 // pred_check
    _
  $region15: #{neural_network_forward.1} parent=0 // pred_check_branch
    %16 = sbr.rel (0) target = $region17
  $region16: #{neural_network_forward.1} parent=0 // pred_region
    _
  $region17: #{neural_network_forward.1} parent=0 // pred_fallthru
    _
  %v18 = vld [vmem:[%s1] sm:$0xf]
  %v19 = vld [vmem:[%s1 + $0x4] sm:$0xf]
  %v20 = vld [vmem:[%s1 + $0x8] sm:$0xf]
  %v21 = vld [vmem:[%s0] sm:$0xf]
  %v22 = vld [vmem:[%s0 + $0x4] sm:$0xf]
  %v23 = vld [vmem:[%s3] sm:$0xff]
  %v24 = vld [vmem:[%s3 + $0x8] sm:$0xff]
  %v25 = vld [vmem:[%s3 + $0x10] sm:$0xff]
  %27 = vset.pattern.permute.xlu0 0
  %28 = vperm.xlu0 %27, %v23
  %v29 = vpop.permute.xlu0 %28
  %32 = vset.pattern.permute.xlu0 0
  %33 = vperm.xlu0 %32, %v24
  %v34 = vpop.permute.xlu0 %33
  %37 = vset.pattern.permute.xlu0 0
  %38 = vperm.xlu0 %37, %v25
  %v39 = vpop.permute.xlu0 %38
  %v44 = vunpack.c.l.b16 %v18
  %v45 = vunpack.c.l.b16 %v19
  %v46 = vunpack.c.l.b16 %v20
  %v47 = vpack.c.b16 %v45, %v44
  %v48 = vpack.c.b16 %v46, %v46
  %v51 = vunpack.c.l.b16 %v21
  %v52 = vunpack.c.l.b16 %v22
  %v53 = vpack.c.b16 %v52, %v51
  %vm55 = vcmask 130048
  %v57 = vsel %vm55, %v47, 0
  %v60 = vsel %vm55, %v48, 0
  %62 = vmatprep.subr.bf16.mxu0 0
  %63 = vmatpush1.bf16.msra.mxu0 %v53
  %64 = vmatprep.subr.bf16.mxu0 0
  %65 = vmatpush1.bf16.msra.mxu0 0
  %66 = vmatprep.subr.bf16.mxu0 0
  %67 = vmatpush1.bf16.msra.mxu0 0
  %68 = vmatprep.subr.bf16.mxu0 0
  %69 = vmatpush1.bf16.msra.mxu0 0
  %70 = vmatprep.subr.bf16.mxu0 0
  %71 = vmatpush1.bf16.msra.mxu0 0
  %72 = vmatprep.subr.bf16.mxu0 0
  %73 = vmatpush1.bf16.msra.mxu0 0
  %74 = vmatprep.subr.bf16.mxu0 0
  %75 = vmatpush1.bf16.msra.mxu0 0
  %76 = vmatprep.subr.bf16.mxu0 0
  %77 = vmatpush1.bf16.msra.mxu0 0
  %78 = vmatprep.subr.bf16.mxu0 0
  %79 = vmatpush1.bf16.msra.mxu0 0
  %80 = vmatprep.subr.bf16.mxu0 0
  %81 = vmatpush1.bf16.msra.mxu0 0
  %82 = vmatprep.subr.bf16.mxu0 0
  %83 = vmatpush1.bf16.msra.mxu0 0
  %84 = vmatprep.subr.bf16.mxu0 0
  %85 = vmatpush1.bf16.msra.mxu0 0
  %86 = vmatprep.subr.bf16.mxu0 0
  %87 = vmatpush1.bf16.msra.mxu0 0
  %88 = vmatprep.subr.bf16.mxu0 0
  %89 = vmatpush1.bf16.msra.mxu0 0
  %90 = vmatprep.subr.bf16.mxu0 0
  %91 = vmatpush1.bf16.msra.mxu0 0
  %92 = vmatprep.subr.bf16.mxu0 0
  %93 = vmatpush1.bf16.msra.mxu0 0
  %94 = vmatprep.mubr.bf16.mxu0 0
  %95 = vmatmul.mubr.bf16.gmra.mrb[0].mxu0 %v57
  %v96 = vpop.f32.mrb[0].mxu0
  %v97 = vadd.f32 %v29, %v96
  %v98 = vpop.f32.mrb[0].mxu0
  %v99 = vpop.f32.mrb[0].mxu0
  %v100 = vadd.f32 %v34, %v99
  %v101 = vpop.f32.mrb[0].mxu0
  %102 = vmatprep.mubr.bf16.mxu0 0
  %103 = vmatmul.mubr.bf16.gmra.mrb[0].mxu0 %v60
  %v104 = vpop.f32.mrb[0].mxu0
  %v105 = vadd.f32 %v39, %v104
  %v106 = vpop.f32.mrb[0].mxu0
  %v107 = vpop.f32.mrb[0].mxu0
  %v108 = vpop.f32.mrb[0].mxu0
  %109 = vdwg.mxu0
  %v110 = vtanh.pop %v97
  %v111 = vtanh.pop %v100
  %v112 = vtanh.pop %v105
  %v113 = vld [vmem:[%s2] sm:$0xf]
  %v114 = vld [vmem:[%s2 + $0x4] sm:$0xf]
  %v115 = vld [vmem:[%s2 + $0x8] sm:$0xf]
  %v116 = vpack.c.bf16 %v111, %v110
  %v117 = vpack.c.bf16 %v112, %v112
  %s118 = scalar_lea.vmem %s3, 24
  %v119 = vld [vmem:[%s118] sm:$0xff]
  %v120 = vld [vmem:[%s118 + $0x8] sm:$0xff]
  %v121 = vld [vmem:[%s118 + $0x10] sm:$0xff]
  %123 = vset.pattern.permute.xlu0 0
  %124 = vperm.xlu0 %123, %v119
  %v125 = vpop.permute.xlu0 %124
  %128 = vset.pattern.permute.xlu0 0
  %129 = vperm.xlu0 %128, %v120
  %v130 = vpop.permute.xlu0 %129
  %133 = vset.pattern.permute.xlu0 0
  %134 = vperm.xlu0 %133, %v121
  %v135 = vpop.permute.xlu0 %134
  %v140 = vunpack.c.l.b16 %v113
  %v141 = vunpack.c.l.b16 %v114
  %v142 = vunpack.c.l.b16 %v115
  %v143 = vpack.c.b16 %v141, %v140
  %v144 = vpack.c.b16 %v142, %v142
  %vm145 = vcmask 195584
  %v147 = vsel %vm145, %v143, 0
  %v150 = vsel %vm145, %v144, 0
  %vm152 = vcmask 1043456
  %v154 = vsel %vm152, %v117, 0
  %156 = vmatprep.subr.bf16.mxu0 0
  %157 = vmatpush1.bf16.msra.mxu0 %v116
  %158 = vmatprep.subr.bf16.mxu0 0
  %159 = vmatpush1.bf16.msra.mxu0 %v154
  %160 = vmatprep.subr.bf16.mxu0 0
  %161 = vmatpush1.bf16.msra.mxu0 0
  %162 = vmatprep.subr.bf16.mxu0 0
  %163 = vmatpush1.bf16.msra.mxu0 0
  %164 = vmatprep.subr.bf16.mxu0 0
  %165 = vmatpush1.bf16.msra.mxu0 0
  %166 = vmatprep.subr.bf16.mxu0 0
  %167 = vmatpush1.bf16.msra.mxu0 0
  %168 = vmatprep.subr.bf16.mxu0 0
  %169 = vmatpush1.bf16.msra.mxu0 0
  %170 = vmatprep.subr.bf16.mxu0 0
  %171 = vmatpush1.bf16.msra.mxu0 0
  %172 = vmatprep.subr.bf16.mxu0 0
  %173 = vmatpush1.bf16.msra.mxu0 0
  %174 = vmatprep.subr.bf16.mxu0 0
  %175 = vmatpush1.bf16.msra.mxu0 0
  %176 = vmatprep.subr.bf16.mxu0 0
  %177 = vmatpush1.bf16.msra.mxu0 0
  %178 = vmatprep.subr.bf16.mxu0 0
  %179 = vmatpush1.bf16.msra.mxu0 0
  %180 = vmatprep.subr.bf16.mxu0 0
  %181 = vmatpush1.bf16.msra.mxu0 0
  %182 = vmatprep.subr.bf16.mxu0 0
  %183 = vmatpush1.bf16.msra.mxu0 0
  %184 = vmatprep.subr.bf16.mxu0 0
  %185 = vmatpush1.bf16.msra.mxu0 0
  %186 = vmatprep.subr.bf16.mxu0 0
  %187 = vmatpush1.bf16.msra.mxu0 0
  %188 = vmatprep.mubr.bf16.mxu0 0
  %189 = vmatmul.mubr.bf16.gmra.mrb[0].mxu0 %v147
  %v190 = vpop.f32.mrb[0].mxu0
  %v191 = vadd.f32 %v125, %v190
  %v192 = vpop.f32.mrb[0].mxu0
  %v193 = vpop.f32.mrb[0].mxu0
  %v194 = vadd.f32 %v130, %v193
  %v195 = vpop.f32.mrb[0].mxu0
  %196 = vmatprep.mubr.bf16.mxu0 0
  %197 = vmatmul.mubr.bf16.gmra.mrb[0].mxu0 %v150
  %v198 = vpop.f32.mrb[0].mxu0
  %v199 = vadd.f32 %v135, %v198
  %v200 = vpop.f32.mrb[0].mxu0
  %v201 = vpop.f32.mrb[0].mxu0
  %v202 = vpop.f32.mrb[0].mxu0
  %203 = vdwg.mxu0
  %v204 = vtanh.pop %v191
  %v205 = vtanh.pop %v194
  %v206 = vtanh.pop %v199
  %s207 = scalar_lea.vmem %s2, 12
  %v208 = vld [vmem:[%s207] sm:$0xf]
  %v209 = vld [vmem:[%s207 + $0x4] sm:$0xf]
  %v210 = vld [vmem:[%s207 + $0x8] sm:$0xf]
  %v211 = vpack.c.bf16 %v205, %v204
  %v212 = vpack.c.bf16 %v206, %v206
  %s213 = scalar_lea.vmem %s3, 48
  %v214 = vld [vmem:[%s213] sm:$0xff]
  %v215 = vld [vmem:[%s213 + $0x8] sm:$0xff]
  %v216 = vld [vmem:[%s213 + $0x10] sm:$0xff]
  %218 = vset.pattern.permute.xlu0 0
  %219 = vperm.xlu0 %218, %v214
  %v220 = vpop.permute.xlu0 %219
  %223 = vset.pattern.permute.xlu0 0
  %224 = vperm.xlu0 %223, %v215
  %v225 = vpop.permute.xlu0 %224
  %228 = vset.pattern.permute.xlu0 0
  %229 = vperm.xlu0 %228, %v216
  %v230 = vpop.permute.xlu0 %229
  %v235 = vunpack.c.l.b16 %v208
  %v236 = vunpack.c.l.b16 %v209
  %v237 = vunpack.c.l.b16 %v210
  %v238 = vpack.c.b16 %v236, %v235
  %v239 = vpack.c.b16 %v237, %v237
  %v241 = vsel %vm145, %v238, 0
  %v244 = vsel %vm145, %v239, 0
  %v247 = vsel %vm152, %v212, 0
  %249 = vmatprep.subr.bf16.mxu0 0
  %250 = vmatpush1.bf16.msra.mxu0 %v211
  %251 = vmatprep.subr.bf16.mxu0 0
  %252 = vmatpush1.bf16.msra.mxu0 %v247
  %253 = vmatprep.subr.bf16.mxu0 0
  %254 = vmatpush1.bf16.msra.mxu0 0
  %255 = vmatprep.subr.bf16.mxu0 0
  %256 = vmatpush1.bf16.msra.mxu0 0
  %257 = vmatprep.subr.bf16.mxu0 0
  %258 = vmatpush1.bf16.msra.mxu0 0
  %259 = vmatprep.subr.bf16.mxu0 0
  %260 = vmatpush1.bf16.msra.mxu0 0
  %261 = vmatprep.subr.bf16.mxu0 0
  %262 = vmatpush1.bf16.msra.mxu0 0
  %263 = vmatprep.subr.bf16.mxu0 0
  %264 = vmatpush1.bf16.msra.mxu0 0
  %265 = vmatprep.subr.bf16.mxu0 0
  %266 = vmatpush1.bf16.msra.mxu0 0
  %267 = vmatprep.subr.bf16.mxu0 0
  %268 = vmatpush1.bf16.msra.mxu0 0
  %269 = vmatprep.subr.bf16.mxu0 0
  %270 = vmatpush1.bf16.msra.mxu0 0
  %271 = vmatprep.subr.bf16.mxu0 0
  %272 = vmatpush1.bf16.msra.mxu0 0
  %273 = vmatprep.subr.bf16.mxu0 0
  %274 = vmatpush1.bf16.msra.mxu0 0
  %275 = vmatprep.subr.bf16.mxu0 0
  %276 = vmatpush1.bf16.msra.mxu0 0
  %277 = vmatprep.subr.bf16.mxu0 0
  %278 = vmatpush1.bf16.msra.mxu0 0
  %279 = vmatprep.subr.bf16.mxu0 0
  %280 = vmatpush1.bf16.msra.mxu0 0
  %281 = vmatprep.mubr.bf16.mxu0 0
  %282 = vmatmul.mubr.bf16.gmra.mrb[0].mxu0 %v241
  %v283 = vpop.f32.mrb[0].mxu0
  %v284 = vadd.f32 %v220, %v283
  %v285 = vpop.f32.mrb[0].mxu0
  %v286 = vpop.f32.mrb[0].mxu0
  %v287 = vadd.f32 %v225, %v286
  %v288 = vpop.f32.mrb[0].mxu0
  %289 = vmatprep.mubr.bf16.mxu0 0
  %290 = vmatmul.mubr.bf16.gmra.mrb[0].mxu0 %v244
  %v291 = vpop.f32.mrb[0].mxu0
  %v292 = vadd.f32 %v230, %v291
  %v293 = vpop.f32.mrb[0].mxu0
  %v294 = vpop.f32.mrb[0].mxu0
  %v295 = vpop.f32.mrb[0].mxu0
  %296 = vdwg.mxu0
  %v297 = vtanh.pop %v284
  %v298 = vtanh.pop %v287
  %v299 = vtanh.pop %v292
  %s300 = scalar_lea.vmem %s2, 24
  %v301 = vld [vmem:[%s300] sm:$0xf]
  %v302 = vld [vmem:[%s300 + $0x4] sm:$0xf]
  %v303 = vld [vmem:[%s300 + $0x8] sm:$0xf]
  %v304 = vpack.c.bf16 %v298, %v297
  %v305 = vpack.c.bf16 %v299, %v299
  %s306 = scalar_lea.vmem %s3, 72
  %v307 = vld [vmem:[%s306] sm:$0xff]
  %v308 = vld [vmem:[%s306 + $0x8] sm:$0xff]
  %v309 = vld [vmem:[%s306 + $0x10] sm:$0xff]
  %311 = vset.pattern.permute.xlu0 0
  %312 = vperm.xlu0 %311, %v307
  %v313 = vpop.permute.xlu0 %312
  %316 = vset.pattern.permute.xlu0 0
  %317 = vperm.xlu0 %316, %v308
  %v318 = vpop.permute.xlu0 %317
  %321 = vset.pattern.permute.xlu0 0
  %322 = vperm.xlu0 %321, %v309
  %v323 = vpop.permute.xlu0 %322
  %v328 = vunpack.c.l.b16 %v301
  %v329 = vunpack.c.l.b16 %v302
  %v330 = vunpack.c.l.b16 %v303
  %v331 = vpack.c.b16 %v329, %v328
  %v332 = vpack.c.b16 %v330, %v330
  %v334 = vsel %vm145, %v331, 0
  %v337 = vsel %vm145, %v332, 0
  %v340 = vsel %vm152, %v305, 0
  %342 = vmatprep.subr.bf16.mxu0 0
  %343 = vmatpush1.bf16.msra.mxu0 %v304
  %344 = vmatprep.subr.bf16.mxu0 0
  %345 = vmatpush1.bf16.msra.mxu0 %v340
  %346 = vmatprep.subr.bf16.mxu0 0
  %347 = vmatpush1.bf16.msra.mxu0 0
  %348 = vmatprep.subr.bf16.mxu0 0
  %349 = vmatpush1.bf16.msra.mxu0 0
  %350 = vmatprep.subr.bf16.mxu0 0
  %351 = vmatpush1.bf16.msra.mxu0 0
  %352 = vmatprep.subr.bf16.mxu0 0
  %353 = vmatpush1.bf16.msra.mxu0 0
  %354 = vmatprep.subr.bf16.mxu0 0
  %355 = vmatpush1.bf16.msra.mxu0 0
  %356 = vmatprep.subr.bf16.mxu0 0
  %357 = vmatpush1.bf16.msra.mxu0 0
  %358 = vmatprep.subr.bf16.mxu0 0
  %359 = vmatpush1.bf16.msra.mxu0 0
  %360 = vmatprep.subr.bf16.mxu0 0
  %361 = vmatpush1.bf16.msra.mxu0 0
  %362 = vmatprep.subr.bf16.mxu0 0
  %363 = vmatpush1.bf16.msra.mxu0 0
  %364 = vmatprep.subr.bf16.mxu0 0
  %365 = vmatpush1.bf16.msra.mxu0 0
  %366 = vmatprep.subr.bf16.mxu0 0
  %367 = vmatpush1.bf16.msra.mxu0 0
  %368 = vmatprep.subr.bf16.mxu0 0
  %369 = vmatpush1.bf16.msra.mxu0 0
  %370 = vmatprep.subr.bf16.mxu0 0
  %371 = vmatpush1.bf16.msra.mxu0 0
  %372 = vmatprep.subr.bf16.mxu0 0
  %373 = vmatpush1.bf16.msra.mxu0 0
  %374 = vmatprep.mubr.bf16.mxu0 0
  %375 = vmatmul.mubr.bf16.gmra.mrb[0].mxu0 %v334
  %v376 = vpop.f32.mrb[0].mxu0
  %v377 = vadd.f32 %v313, %v376
  %v378 = vpop.f32.mrb[0].mxu0
  %v379 = vpop.f32.mrb[0].mxu0
  %v380 = vadd.f32 %v318, %v379
  %v381 = vpop.f32.mrb[0].mxu0
  %382 = vmatprep.mubr.bf16.mxu0 0
  %383 = vmatmul.mubr.bf16.gmra.mrb[0].mxu0 %v337
  %v384 = vpop.f32.mrb[0].mxu0
  %v385 = vadd.f32 %v323, %v384
  %v386 = vpop.f32.mrb[0].mxu0
  %v387 = vpop.f32.mrb[0].mxu0
  %v388 = vpop.f32.mrb[0].mxu0
  %389 = vdwg.mxu0
  %v390 = vtanh.pop %v377
  %v391 = vtanh.pop %v380
  %v392 = vtanh.pop %v385
  %s393 = scalar_lea.vmem %s2, 36
  %v394 = vld [vmem:[%s393] sm:$0xf]
  %v395 = vld [vmem:[%s393 + $0x4] sm:$0xf]
  %v396 = vld [vmem:[%s393 + $0x8] sm:$0xf]
  %v397 = vpack.c.bf16 %v391, %v390
  %v398 = vpack.c.bf16 %v392, %v392
  %s399 = scalar_lea.vmem %s3, 96
  %v400 = vld [vmem:[%s399] sm:$0xff]
  %v401 = vld [vmem:[%s399 + $0x8] sm:$0xff]
  %v402 = vld [vmem:[%s399 + $0x10] sm:$0xff]
  %404 = vset.pattern.permute.xlu0 0
  %405 = vperm.xlu0 %404, %v400
  %v406 = vpop.permute.xlu0 %405
  %409 = vset.pattern.permute.xlu0 0
  %410 = vperm.xlu0 %409, %v401
  %v411 = vpop.permute.xlu0 %410
  %414 = vset.pattern.permute.xlu0 0
  %415 = vperm.xlu0 %414, %v402
  %v416 = vpop.permute.xlu0 %415
  %v421 = vunpack.c.l.b16 %v394
  %v422 = vunpack.c.l.b16 %v395
  %v423 = vunpack.c.l.b16 %v396
  %v424 = vpack.c.b16 %v422, %v421
  %v425 = vpack.c.b16 %v423, %v423
  %v427 = vsel %vm145, %v424, 0
  %v430 = vsel %vm145, %v425, 0
  %v433 = vsel %vm152, %v398, 0
  %435 = vmatprep.subr.bf16.mxu0 0
  %436 = vmatpush1.bf16.msra.mxu0 %v397
  %437 = vmatprep.subr.bf16.mxu0 0
  %438 = vmatpush1.bf16.msra.mxu0 %v433
  %439 = vmatprep.subr.bf16.mxu0 0
  %440 = vmatpush1.bf16.msra.mxu0 0
  %441 = vmatprep.subr.bf16.mxu0 0
  %442 = vmatpush1.bf16.msra.mxu0 0
  %443 = vmatprep.subr.bf16.mxu0 0
  %444 = vmatpush1.bf16.msra.mxu0 0
  %445 = vmatprep.subr.bf16.mxu0 0
  %446 = vmatpush1.bf16.msra.mxu0 0
  %447 = vmatprep.subr.bf16.mxu0 0
  %448 = vmatpush1.bf16.msra.mxu0 0
  %449 = vmatprep.subr.bf16.mxu0 0
  %450 = vmatpush1.bf16.msra.mxu0 0
  %451 = vmatprep.subr.bf16.mxu0 0
  %452 = vmatpush1.bf16.msra.mxu0 0
  %453 = vmatprep.subr.bf16.mxu0 0
  %454 = vmatpush1.bf16.msra.mxu0 0
  %455 = vmatprep.subr.bf16.mxu0 0
  %456 = vmatpush1.bf16.msra.mxu0 0
  %457 = vmatprep.subr.bf16.mxu0 0
  %458 = vmatpush1.bf16.msra.mxu0 0
  %459 = vmatprep.subr.bf16.mxu0 0
  %460 = vmatpush1.bf16.msra.mxu0 0
  %461 = vmatprep.subr.bf16.mxu0 0
  %462 = vmatpush1.bf16.msra.mxu0 0
  %463 = vmatprep.subr.bf16.mxu0 0
  %464 = vmatpush1.bf16.msra.mxu0 0
  %465 = vmatprep.subr.bf16.mxu0 0
  %466 = vmatpush1.bf16.msra.mxu0 0
  %467 = vmatprep.mubr.bf16.mxu0 0
  %468 = vmatmul.mubr.bf16.gmra.mrb[0].mxu0 %v427
  %v469 = vpop.f32.mrb[0].mxu0
  %v470 = vadd.f32 %v406, %v469
  %v471 = vpop.f32.mrb[0].mxu0
  %v472 = vpop.f32.mrb[0].mxu0
  %v473 = vadd.f32 %v411, %v472
  %v474 = vpop.f32.mrb[0].mxu0
  %475 = vmatprep.mubr.bf16.mxu0 0
  %476 = vmatmul.mubr.bf16.gmra.mrb[0].mxu0 %v430
  %v477 = vpop.f32.mrb[0].mxu0
  %v478 = vadd.f32 %v416, %v477
  %v479 = vpop.f32.mrb[0].mxu0
  %v480 = vpop.f32.mrb[0].mxu0
  %v481 = vpop.f32.mrb[0].mxu0
  %482 = vdwg.mxu0
  %v483 = vtanh.pop %v470
  %v484 = vtanh.pop %v473
  %v485 = vtanh.pop %v478
  %s486 = scalar_lea.vmem %s2, 48
  %v487 = vld [vmem:[%s486] sm:$0xf]
  %v488 = vld [vmem:[%s486 + $0x4] sm:$0xf]
  %v489 = vld [vmem:[%s486 + $0x8] sm:$0xf]
  %v490 = vpack.c.bf16 %v484, %v483
  %v491 = vpack.c.bf16 %v485, %v485
  %s492 = scalar_lea.vmem %s3, 120
  %v493 = vld [vmem:[%s492] sm:$0xff]
  %v494 = vld [vmem:[%s492 + $0x8] sm:$0xff]
  %v495 = vld [vmem:[%s492 + $0x10] sm:$0xff]
  %497 = vset.pattern.permute.xlu0 0
  %498 = vperm.xlu0 %497, %v493
  %v499 = vpop.permute.xlu0 %498
  %502 = vset.pattern.permute.xlu0 0
  %503 = vperm.xlu0 %502, %v494
  %v504 = vpop.permute.xlu0 %503
  %507 = vset.pattern.permute.xlu0 0
  %508 = vperm.xlu0 %507, %v495
  %v509 = vpop.permute.xlu0 %508
  %v514 = vunpack.c.l.b16 %v487
  %v515 = vunpack.c.l.b16 %v488
  %v516 = vunpack.c.l.b16 %v489
  %v517 = vpack.c.b16 %v515, %v514
  %v518 = vpack.c.b16 %v516, %v516
  %v520 = vsel %vm145, %v517, 0
  %v523 = vsel %vm145, %v518, 0
  %v526 = vsel %vm152, %v491, 0
  %528 = vmatprep.subr.bf16.mxu0 0
  %529 = vmatpush1.bf16.msra.mxu0 %v490
  %530 = vmatprep.subr.bf16.mxu0 0
  %531 = vmatpush1.bf16.msra.mxu0 %v526
  %532 = vmatprep.subr.bf16.mxu0 0
  %533 = vmatpush1.bf16.msra.mxu0 0
  %534 = vmatprep.subr.bf16.mxu0 0
  %535 = vmatpush1.bf16.msra.mxu0 0
  %536 = vmatprep.subr.bf16.mxu0 0
  %537 = vmatpush1.bf16.msra.mxu0 0
  %538 = vmatprep.subr.bf16.mxu0 0
  %539 = vmatpush1.bf16.msra.mxu0 0
  %540 = vmatprep.subr.bf16.mxu0 0
  %541 = vmatpush1.bf16.msra.mxu0 0
  %542 = vmatprep.subr.bf16.mxu0 0
  %543 = vmatpush1.bf16.msra.mxu0 0
  %544 = vmatprep.subr.bf16.mxu0 0
  %545 = vmatpush1.bf16.msra.mxu0 0
  %546 = vmatprep.subr.bf16.mxu0 0
  %547 = vmatpush1.bf16.msra.mxu0 0
  %548 = vmatprep.subr.bf16.mxu0 0
  %549 = vmatpush1.bf16.msra.mxu0 0
  %550 = vmatprep.subr.bf16.mxu0 0
  %551 = vmatpush1.bf16.msra.mxu0 0
  %552 = vmatprep.subr.bf16.mxu0 0
  %553 = vmatpush1.bf16.msra.mxu0 0
  %554 = vmatprep.subr.bf16.mxu0 0
  %555 = vmatpush1.bf16.msra.mxu0 0
  %556 = vmatprep.subr.bf16.mxu0 0
  %557 = vmatpush1.bf16.msra.mxu0 0
  %558 = vmatprep.subr.bf16.mxu0 0
  %559 = vmatpush1.bf16.msra.mxu0 0
  %560 = vmatprep.mubr.bf16.mxu0 0
  %561 = vmatmul.mubr.bf16.gmra.mrb[0].mxu0 %v520
  %v562 = vpop.f32.mrb[0].mxu0
  %v563 = vadd.f32 %v499, %v562
  %v564 = vpop.f32.mrb[0].mxu0
  %v565 = vpop.f32.mrb[0].mxu0
  %v566 = vadd.f32 %v504, %v565
  %v567 = vpop.f32.mrb[0].mxu0
  %568 = vmatprep.mubr.bf16.mxu0 0
  %569 = vmatmul.mubr.bf16.gmra.mrb[0].mxu0 %v523
  %v570 = vpop.f32.mrb[0].mxu0
  %v571 = vadd.f32 %v509, %v570
  %v572 = vpop.f32.mrb[0].mxu0
  %v573 = vpop.f32.mrb[0].mxu0
  %v574 = vpop.f32.mrb[0].mxu0
  %575 = vdwg.mxu0
  %v576 = vtanh.pop %v563
  %v577 = vtanh.pop %v566
  %v578 = vtanh.pop %v571
  %s579 = scalar_lea.vmem %s2, 60
  %v580 = vld [vmem:[%s579] sm:$0xf]
  %v581 = vld [vmem:[%s579 + $0x4] sm:$0xf]
  %v582 = vld [vmem:[%s579 + $0x8] sm:$0xf]
  %v583 = vpack.c.bf16 %v577, %v576
  %v584 = vpack.c.bf16 %v578, %v578
  %s585 = scalar_lea.vmem %s3, 144
  %v586 = vld [vmem:[%s585] sm:$0xff]
  %v587 = vld [vmem:[%s585 + $0x8] sm:$0xff]
  %v588 = vld [vmem:[%s585 + $0x10] sm:$0xff]
  %590 = vset.pattern.permute.xlu0 0
  %591 = vperm.xlu0 %590, %v586
  %v592 = vpop.permute.xlu0 %591
  %595 = vset.pattern.permute.xlu0 0
  %596 = vperm.xlu0 %595, %v587
  %v597 = vpop.permute.xlu0 %596
  %600 = vset.pattern.permute.xlu0 0
  %601 = vperm.xlu0 %600, %v588
  %v602 = vpop.permute.xlu0 %601
  %v607 = vunpack.c.l.b16 %v580
  %v608 = vunpack.c.l.b16 %v581
  %v609 = vunpack.c.l.b16 %v582
  %v610 = vpack.c.b16 %v608, %v607
  %v611 = vpack.c.b16 %v609, %v609
  %v613 = vsel %vm145, %v610, 0
  %v616 = vsel %vm145, %v611, 0
  %v619 = vsel %vm152, %v584, 0
  %621 = vmatprep.subr.bf16.mxu0 0
  %622 = vmatpush1.bf16.msra.mxu0 %v583
  %623 = vmatprep.subr.bf16.mxu0 0
  %624 = vmatpush1.bf16.msra.mxu0 %v619
  %625 = vmatprep.subr.bf16.mxu0 0
  %626 = vmatpush1.bf16.msra.mxu0 0
  %627 = vmatprep.subr.bf16.mxu0 0
  %628 = vmatpush1.bf16.msra.mxu0 0
  %629 = vmatprep.subr.bf16.mxu0 0
  %630 = vmatpush1.bf16.msra.mxu0 0
  %631 = vmatprep.subr.bf16.mxu0 0
  %632 = vmatpush1.bf16.msra.mxu0 0
  %633 = vmatprep.subr.bf16.mxu0 0
  %634 = vmatpush1.bf16.msra.mxu0 0
  %635 = vmatprep.subr.bf16.mxu0 0
  %636 = vmatpush1.bf16.msra.mxu0 0
  %637 = vmatprep.subr.bf16.mxu0 0
  %638 = vmatpush1.bf16.msra.mxu0 0
  %639 = vmatprep.subr.bf16.mxu0 0
  %640 = vmatpush1.bf16.msra.mxu0 0
  %641 = vmatprep.subr.bf16.mxu0 0
  %642 = vmatpush1.bf16.msra.mxu0 0
  %643 = vmatprep.subr.bf16.mxu0 0
  %644 = vmatpush1.bf16.msra.mxu0 0
  %645 = vmatprep.subr.bf16.mxu0 0
  %646 = vmatpush1.bf16.msra.mxu0 0
  %647 = vmatprep.subr.bf16.mxu0 0
  %648 = vmatpush1.bf16.msra.mxu0 0
  %649 = vmatprep.subr.bf16.mxu0 0
  %650 = vmatpush1.bf16.msra.mxu0 0
  %651 = vmatprep.subr.bf16.mxu0 0
  %652 = vmatpush1.bf16.msra.mxu0 0
  %653 = vmatprep.mubr.bf16.mxu0 0
  %654 = vmatmul.mubr.bf16.gmra.mrb[0].mxu0 %v613
  %v655 = vpop.f32.mrb[0].mxu0
  %v656 = vadd.f32 %v592, %v655
  %v657 = vpop.f32.mrb[0].mxu0
  %v658 = vpop.f32.mrb[0].mxu0
  %v659 = vadd.f32 %v597, %v658
  %v660 = vpop.f32.mrb[0].mxu0
  %661 = vmatprep.mubr.bf16.mxu0 0
  %662 = vmatmul.mubr.bf16.gmra.mrb[0].mxu0 %v616
  %v663 = vpop.f32.mrb[0].mxu0
  %v664 = vadd.f32 %v602, %v663
  %v665 = vpop.f32.mrb[0].mxu0
  %v666 = vpop.f32.mrb[0].mxu0
  %v667 = vpop.f32.mrb[0].mxu0
  %668 = vdwg.mxu0
  %v669 = vtanh.pop %v656
  %v670 = vtanh.pop %v659
  %v671 = vtanh.pop %v664
  %s672 = scalar_lea.vmem %s2, 72
  %v673 = vld [vmem:[%s672] sm:$0xf]
  %v674 = vld [vmem:[%s672 + $0x4] sm:$0xf]
  %v675 = vld [vmem:[%s672 + $0x8] sm:$0xf]
  %v676 = vpack.c.bf16 %v670, %v669
  %v677 = vpack.c.bf16 %v671, %v671
  %s678 = scalar_lea.vmem %s3, 168
  %v679 = vld [vmem:[%s678] sm:$0xff]
  %v680 = vld [vmem:[%s678 + $0x8] sm:$0xff]
  %v681 = vld [vmem:[%s678 + $0x10] sm:$0xff]
  %683 = vset.pattern.permute.xlu0 0
  %684 = vperm.xlu0 %683, %v679
  %v685 = vpop.permute.xlu0 %684
  %688 = vset.pattern.permute.xlu0 0
  %689 = vperm.xlu0 %688, %v680
  %v690 = vpop.permute.xlu0 %689
  %692 = vset.pattern.permute.xlu0 0
  %693 = vperm.xlu0 %692, %v681
  %v694 = vpop.permute.xlu0 %693
  %v698 = vunpack.c.l.b16 %v673
  %v699 = vunpack.c.l.b16 %v674
  %v700 = vunpack.c.l.b16 %v675
  %v701 = vpack.c.b16 %v699, %v698
  %v702 = vpack.c.b16 %v700, %v700
  %v704 = vsel %vm145, %v701, 0
  %v707 = vsel %vm145, %v702, 0
  %v710 = vsel %vm152, %v677, 0
  %712 = vmatprep.subr.bf16.mxu0 0
  %713 = vmatpush1.bf16.msra.mxu0 %v676
  %714 = vmatprep.subr.bf16.mxu0 0
  %715 = vmatpush1.bf16.msra.mxu0 %v710
  %716 = vmatprep.subr.bf16.mxu0 0
  %717 = vmatpush1.bf16.msra.mxu0 0
  %718 = vmatprep.subr.bf16.mxu0 0
  %719 = vmatpush1.bf16.msra.mxu0 0
  %720 = vmatprep.subr.bf16.mxu0 0
  %721 = vmatpush1.bf16.msra.mxu0 0
  %722 = vmatprep.subr.bf16.mxu0 0
  %723 = vmatpush1.bf16.msra.mxu0 0
  %724 = vmatprep.subr.bf16.mxu0 0
  %725 = vmatpush1.bf16.msra.mxu0 0
  %726 = vmatprep.subr.bf16.mxu0 0
  %727 = vmatpush1.bf16.msra.mxu0 0
  %728 = vmatprep.subr.bf16.mxu0 0
  %729 = vmatpush1.bf16.msra.mxu0 0
  %730 = vmatprep.subr.bf16.mxu0 0
  %731 = vmatpush1.bf16.msra.mxu0 0
  %732 = vmatprep.subr.bf16.mxu0 0
  %733 = vmatpush1.bf16.msra.mxu0 0
  %734 = vmatprep.subr.bf16.mxu0 0
  %735 = vmatpush1.bf16.msra.mxu0 0
  %736 = vmatprep.subr.bf16.mxu0 0
  %737 = vmatpush1.bf16.msra.mxu0 0
  %738 = vmatprep.subr.bf16.mxu0 0
  %739 = vmatpush1.bf16.msra.mxu0 0
  %740 = vmatprep.subr.bf16.mxu0 0
  %741 = vmatpush1.bf16.msra.mxu0 0
  %742 = vmatprep.subr.bf16.mxu0 0
  %743 = vmatpush1.bf16.msra.mxu0 0
  %744 = vmatprep.mubr.bf16.mxu0 0
  %745 = vmatmul.mubr.bf16.gmra.mrb[0].mxu0 %v704
  %v746 = vpop.f32.mrb[0].mxu0
  %v747 = vadd.f32 %v685, %v746
  %v748 = vpop.f32.mrb[0].mxu0
  %v749 = vpop.f32.mrb[0].mxu0
  %v750 = vpop.f32.mrb[0].mxu0
  %751 = vmatprep.mubr.bf16.mxu0 0
  %752 = vmatmul.mubr.bf16.gmra.mrb[0].mxu0 %v707
  %v753 = vpop.f32.mrb[0].mxu0
  %v754 = vpop.f32.mrb[0].mxu0
  %v755 = vpop.f32.mrb[0].mxu0
  %v756 = vpop.f32.mrb[0].mxu0
  %757 = vdwg.mxu0
  %v758 = vtanh.pop %v747
  %v759 = vmul.f32 %v758, 0.5
  %v760 = vadd.f32 %v759, 0.5
  %761 = vst [vmem:[%s4] sm:$0xf] %v760
  // Predicated region
  $region18: #{neural_network_forward.1} parent=0 // pred_check
    _
  $region19: #{neural_network_forward.1} parent=0 // pred_check_branch
    %763 = sbr.rel (0) target = $region21
  $region20: #{neural_network_forward.1} parent=0 // pred_region
    _
  $region21: #{neural_network_forward.1} parent=0 // pred_fallthru
    _
  // Predicated region
  $region22: #{neural_network_forward.1} parent=0 // pred_check
    _
  $region23: #{neural_network_forward.1} parent=0 // pred_check_branch
    %765 = sbr.rel (0) target = $region25
  $region24: #{neural_network_forward.1} parent=0 // pred_region
    _
  $region25: #{neural_network_forward.1} parent=0 // pred_fallthru
    _

</llo_original>
